<compile_context>
chip_gen: v7x
topology: tpu7x:2x2x1
jax: 0.10.0
libtpu: 0.0.40
codegen_flags: <defaults>
</compile_context>

<pallas_src>
import functools

import jax
import jax.numpy as jnp
from jax.experimental import pallas as pl
from jax.experimental.pallas import tpu as pltpu

HIDDEN = 256


def _softq_kernel(x_ref, a_ref, w1x_ref, w1a_ref, b1_ref, w2_ref, b2_ref,
                  w3_ref, b3_ref, out_ref):
    w_dtype = w2_ref.dtype
    # fc1 (concat folded in) + relu; f32 accumulation on the MXU.
    h1 = jnp.dot(x_ref[...], w1x_ref[...], preferred_element_type=jnp.float32)
    h1 += jnp.dot(a_ref[...], w1a_ref[...], preferred_element_type=jnp.float32)
    h1 = jnp.maximum(h1 + b1_ref[...], 0.0)
    # fc2 + relu.
    h2 = jnp.dot(h1.astype(w_dtype), w2_ref[...],
                 preferred_element_type=jnp.float32)
    h2 = jnp.maximum(h2 + b2_ref[...], 0.0)
    # fc3 (out_features == 1): keep it off the MXU -> VPU mul + lane reduce.
    w3_row = w3_ref[...].astype(jnp.float32)                     # [1, 256]
    q = jnp.sum(h2 * w3_row, axis=-1, keepdims=True) + b3_ref[0, 0]
    out_ref[...] = q.astype(out_ref.dtype)


def _round_up(n, m):
    return ((n + m - 1) // m) * m


@functools.partial(jax.jit, static_argnames=("max_batch_tile",))
def soft_q_forward(x, a, params, *, max_batch_tile=512):
    """x: [B, n_state], a: [B, n_action] -> q: [B, 1] (float32)."""
    w1x, w1a, b1, w2, b2, w3, b3 = params
    B, n_state = x.shape
    n_action = a.shape[1]
    w_dtype = w2.dtype

    # Cast activations to the weight dtype (no-op for f32 params).
    x = x.astype(w_dtype)
    a = a.astype(w_dtype)

    # Batch tile: multiple of 8 sublanes, capped so large batches pipeline.
    TB = min(max_batch_tile, _round_up(B, 8))
    B_pad = _round_up(B, TB)
    if B_pad != B:
        x = jnp.pad(x, ((0, B_pad - B), (0, 0)))
        a = jnp.pad(a, ((0, B_pad - B), (0, 0)))

    act_spec = lambda f: pl.BlockSpec((TB, f), lambda i: (i, 0))
    const_spec = lambda shape: pl.BlockSpec(shape, lambda i: (0, 0))

    q = pl.pallas_call(
        _softq_kernel,
        out_shape=jax.ShapeDtypeStruct((B_pad, 1), jnp.float32),
        grid=(B_pad // TB,),
        in_specs=[
            act_spec(n_state),                          # x block
            act_spec(n_action),                         # a block
            const_spec((n_state, HIDDEN)),              # w1_x (VMEM resident)
            const_spec((n_action, HIDDEN)),             # w1_a (VMEM resident)
            const_spec((1, HIDDEN)),                    # b1
            const_spec((HIDDEN, HIDDEN)),               # w2
            const_spec((1, HIDDEN)),                    # b2
            const_spec((1, HIDDEN)),                    # w3 row (VPU head)
            pl.BlockSpec((1, 1), lambda i: (0, 0),
                         memory_space=pltpu.MemorySpace.SMEM),  # b3 scalar
        ],
        out_specs=act_spec(1),
        compiler_params=pltpu.CompilerParams(
            dimension_semantics=("parallel",)),
    )(x, a, w1x, w1a, b1, w2, b2, w3, b3)

    return q[:B]


def init_params(key, n_state, n_action, dtype=jnp.float32):
    """PyTorch nn.Linear default init (U(-1/sqrt(fan_in), 1/sqrt(fan_in))),
    weights stored [in, out], fc1 split into state/action halves, fc3 as a row."""
    n_in = n_state + n_action
    dims = [(n_in, HIDDEN), (HIDDEN, HIDDEN), (HIDDEN, 1)]
    keys = jax.random.split(key, 2 * len(dims))
    raw = []
    for i, (fi, fo) in enumerate(dims):
        bound = 1.0 / (fi ** 0.5)
        w = jax.random.uniform(keys[2 * i], (fi, fo), jnp.float32, -bound, bound)
        b = jax.random.uniform(keys[2 * i + 1], (1, fo), jnp.float32, -bound, bound)
        raw.append((w, b))
    (w1, b1), (w2, b2), (w3, b3) = raw
    w1x, w1a = w1[:n_state], w1[n_state:]
    w3_row = w3.T                                        # [1, 256]
    # Weights take `dtype` (bf16 option for v6e/v7x); biases stay f32.
    return (w1x.astype(dtype), w1a.astype(dtype), b1,
            w2.astype(dtype), b2,
            w3_row.astype(dtype), b3)


def reference(x, a, params):
    w1x, w1a, b1, w2, b2, w3, b3 = params
    xa = jnp.concatenate([x, a], axis=1)
    w1 = jnp.concatenate([w1x, w1a], axis=0).astype(jnp.float32)
    h1 = jnp.maximum(xa @ w1 + b1, 0.0)
    h2 = jnp.maximum(h1 @ w2.astype(jnp.float32) + b2, 0.0)
    return h2 @ w3.astype(jnp.float32).T + b3


if __name__ == "__main__":
    key = jax.random.PRNGKey(0)
    k_p, k_x, k_a, k_x2, k_a2 = jax.random.split(key, 5)

    n_state, n_action = 24, 8
    params = init_params(k_p, n_state, n_action)

    # Small inference-style batch (single grid step).
    B = 8
    x = jax.random.normal(k_x, (B, n_state), jnp.float32)
    a = jax.random.normal(k_a, (B, n_action), jnp.float32)
    q = jax.block_until_ready(soft_q_forward(x, a, params))
    assert q.shape == (B, 1)
    assert jnp.allclose(q, reference(x, a, params), atol=1e-4, rtol=1e-4)

    # Ragged training-style batch: exercises the batch grid + padding path.
    B2 = 133
    x2 = jax.random.normal(k_x2, (B2, n_state), jnp.float32)
    a2 = jax.random.normal(k_a2, (B2, n_action), jnp.float32)
    q2 = jax.block_until_ready(soft_q_forward(x2, a2, params, max_batch_tile=64))
    assert q2.shape == (B2, 1)
    assert jnp.allclose(q2, reference(x2, a2, params), atol=1e-4, rtol=1e-4)

    # Note: for SAC training the Q1/Q2 critic pair could be fused into one
    # pallas_call to amortize the weight fetch; out of scope for this module.
    print("KERNEL_OK")
</pallas_src>

<mosaic_0001>
module attributes {stable_mosaic.version = 11 : i64} {
  func.func @_softq_kernel(%arg0: i32, %arg1: memref<8x24xf32, #tpu.memory_space<vmem>>, %arg2: memref<8x8xf32, #tpu.memory_space<vmem>>, %arg3: memref<24x256xf32, #tpu.memory_space<vmem>>, %arg4: memref<8x256xf32, #tpu.memory_space<vmem>>, %arg5: memref<1x256xf32, #tpu.memory_space<vmem>>, %arg6: memref<256x256xf32, #tpu.memory_space<vmem>>, %arg7: memref<1x256xf32, #tpu.memory_space<vmem>>, %arg8: memref<1x256xf32, #tpu.memory_space<vmem>>, %arg9: memref<1x1xf32, #tpu.memory_space<smem>>, %arg10: memref<8x1xf32, #tpu.memory_space<vmem>>) attributes {dimension_semantics = [#tpu.dimension_semantics<parallel>], iteration_bounds = array<i64: 1>, scalar_prefetch = 0 : i64, scratch_operands = 0 : i64, tpu.core_type = #tpu.core_type<tc>, window_params = [{transform_indices = @transform_0, window_bounds = array<i64: 8, 24>}, {transform_indices = @transform_1, window_bounds = array<i64: 8, 8>}, {pipeline_mode = #tpu.pipeline_mode<synchronous>, transform_indices = @transform_2, window_bounds = array<i64: 24, 256>}, {pipeline_mode = #tpu.pipeline_mode<synchronous>, transform_indices = @transform_3, window_bounds = array<i64: 8, 256>}, {pipeline_mode = #tpu.pipeline_mode<synchronous>, transform_indices = @transform_4, window_bounds = array<i64: 1, 256>}, {pipeline_mode = #tpu.pipeline_mode<synchronous>, transform_indices = @transform_5, window_bounds = array<i64: 256, 256>}, {pipeline_mode = #tpu.pipeline_mode<synchronous>, transform_indices = @transform_6, window_bounds = array<i64: 1, 256>}, {pipeline_mode = #tpu.pipeline_mode<synchronous>, transform_indices = @transform_7, window_bounds = array<i64: 1, 256>}, {transform_indices = @transform_8, window_bounds = array<i64: 1, 1>}, {transform_indices = @transform_9, window_bounds = array<i64: 8, 1>}]} {
    %c0 = arith.constant 0 : index
    %c0_0 = arith.constant 0 : index
    %0 = vector.load %arg1[%c0, %c0_0] : memref<8x24xf32, #tpu.memory_space<vmem>>, vector<8x24xf32>
    %c0_1 = arith.constant 0 : index
    %c0_2 = arith.constant 0 : index
    %1 = vector.load %arg3[%c0_1, %c0_2] : memref<24x256xf32, #tpu.memory_space<vmem>>, vector<24x256xf32>
    %cst = arith.constant dense<0.000000e+00> : vector<8x256xf32>
    %2 = tpu.matmul %0, %1, %cst {dimension_numbers = #tpu.dot_dimension_numbers<[1], [0], [0], [1], [0, 0, 1, 1], [], []>} : vector<8x24xf32>, vector<24x256xf32>, vector<8x256xf32> -> vector<8x256xf32>
    %c0_3 = arith.constant 0 : index
    %c0_4 = arith.constant 0 : index
    %3 = vector.load %arg2[%c0_3, %c0_4] : memref<8x8xf32, #tpu.memory_space<vmem>>, vector<8x8xf32>
    %c0_5 = arith.constant 0 : index
    %c0_6 = arith.constant 0 : index
    %4 = vector.load %arg4[%c0_5, %c0_6] : memref<8x256xf32, #tpu.memory_space<vmem>>, vector<8x256xf32>
    %cst_7 = arith.constant dense<0.000000e+00> : vector<8x256xf32>
    %5 = tpu.matmul %3, %4, %cst_7 {dimension_numbers = #tpu.dot_dimension_numbers<[1], [0], [0], [1], [0, 0, 1, 1], [], []>} : vector<8x8xf32>, vector<8x256xf32>, vector<8x256xf32> -> vector<8x256xf32>
    %6 = arith.addf %2, %5 : vector<8x256xf32>
    %c0_8 = arith.constant 0 : index
    %c0_9 = arith.constant 0 : index
    %7 = vector.load %arg5[%c0_8, %c0_9] : memref<1x256xf32, #tpu.memory_space<vmem>>, vector<1x256xf32>
    %8 = vector.broadcast %7 : vector<1x256xf32> to vector<8x256xf32>
    %9 = arith.addf %6, %8 : vector<8x256xf32>
    %cst_10 = arith.constant 0.000000e+00 : f32
    %10 = vector.broadcast %cst_10 : f32 to vector<8x256xf32>
    %11 = arith.maximumf %9, %10 : vector<8x256xf32>
    %c0_11 = arith.constant 0 : index
    %c0_12 = arith.constant 0 : index
    %12 = vector.load %arg6[%c0_11, %c0_12] : memref<256x256xf32, #tpu.memory_space<vmem>>, vector<256x256xf32>
    %cst_13 = arith.constant dense<0.000000e+00> : vector<8x256xf32>
    %13 = tpu.matmul %11, %12, %cst_13 {dimension_numbers = #tpu.dot_dimension_numbers<[1], [0], [0], [1], [0, 0, 1, 1], [], []>} : vector<8x256xf32>, vector<256x256xf32>, vector<8x256xf32> -> vector<8x256xf32>
    %c0_14 = arith.constant 0 : index
    %c0_15 = arith.constant 0 : index
    %14 = vector.load %arg7[%c0_14, %c0_15] : memref<1x256xf32, #tpu.memory_space<vmem>>, vector<1x256xf32>
    %15 = vector.broadcast %14 : vector<1x256xf32> to vector<8x256xf32>
    %16 = arith.addf %13, %15 : vector<8x256xf32>
    %cst_16 = arith.constant 0.000000e+00 : f32
    %17 = vector.broadcast %cst_16 : f32 to vector<8x256xf32>
    %18 = arith.maximumf %16, %17 : vector<8x256xf32>
    %c0_17 = arith.constant 0 : index
    %c0_18 = arith.constant 0 : index
    %19 = vector.load %arg8[%c0_17, %c0_18] : memref<1x256xf32, #tpu.memory_space<vmem>>, vector<1x256xf32>
    %20 = vector.broadcast %19 : vector<1x256xf32> to vector<8x256xf32>
    %21 = arith.mulf %18, %20 : vector<8x256xf32>
    %cst_19 = arith.constant dense<0.000000e+00> : vector<8xf32>
    %22 = vector.multi_reduction <add>, %21, %cst_19 [1] : vector<8x256xf32> to vector<8xf32>
    %23 = vector.shape_cast %22 : vector<8xf32> to vector<8x1xf32>
    %c0_20 = arith.constant 0 : index
    %c0_21 = arith.constant 0 : index
    %24 = memref.load %arg9[%c0_20, %c0_21] : memref<1x1xf32, #tpu.memory_space<smem>>
    %25 = vector.broadcast %24 : f32 to vector<8x1xf32>
    %26 = arith.addf %23, %25 : vector<8x1xf32>
    %c0_22 = arith.constant 0 : index
    %c0_23 = arith.constant 0 : index
    %27 = vector.load %arg10[%c0_22, %c0_23] : memref<8x1xf32, #tpu.memory_space<vmem>>, vector<8x1xf32>
    tpu.vector_store %arg10[%c0_22, %c0_23], %26 {strides = array<i32>} : memref<8x1xf32, #tpu.memory_space<vmem>>, vector<8x1xf32>,
    return
  }
  func.func @transform_0(%arg0: i32) -> (i32, i32) {
    %c0_i32 = arith.constant 0 : i32
    %c0_i32_0 = arith.constant 0 : i32
    return %arg0, %c0_i32 : i32, i32
  }
  func.func @transform_1(%arg0: i32) -> (i32, i32) {
    %c0_i32 = arith.constant 0 : i32
    %c0_i32_0 = arith.constant 0 : i32
    return %arg0, %c0_i32 : i32, i32
  }
  func.func @transform_2(%arg0: i32) -> (i32, i32) {
    %c0_i32 = arith.constant 0 : i32
    %c0_i32_0 = arith.constant 0 : i32
    %c0_i32_1 = arith.constant 0 : i32
    return %c0_i32, %c0_i32_0 : i32, i32
  }
  func.func @transform_3(%arg0: i32) -> (i32, i32) {
    %c0_i32 = arith.constant 0 : i32
    %c0_i32_0 = arith.constant 0 : i32
    %c0_i32_1 = arith.constant 0 : i32
    return %c0_i32, %c0_i32_0 : i32, i32
  }
  func.func @transform_4(%arg0: i32) -> (i32, i32) {
    %c0_i32 = arith.constant 0 : i32
    %c0_i32_0 = arith.constant 0 : i32
    %c0_i32_1 = arith.constant 0 : i32
    return %c0_i32, %c0_i32_0 : i32, i32
  }
  func.func @transform_5(%arg0: i32) -> (i32, i32) {
    %c0_i32 = arith.constant 0 : i32
    %c0_i32_0 = arith.constant 0 : i32
    %c0_i32_1 = arith.constant 0 : i32
    return %c0_i32, %c0_i32_0 : i32, i32
  }
  func.func @transform_6(%arg0: i32) -> (i32, i32) {
    %c0_i32 = arith.constant 0 : i32
    %c0_i32_0 = arith.constant 0 : i32
    %c0_i32_1 = arith.constant 0 : i32
    return %c0_i32, %c0_i32_0 : i32, i32
  }
  func.func @transform_7(%arg0: i32) -> (i32, i32) {
    %c0_i32 = arith.constant 0 : i32
    %c0_i32_0 = arith.constant 0 : i32
    %c0_i32_1 = arith.constant 0 : i32
    return %c0_i32, %c0_i32_0 : i32, i32
  }
  func.func @transform_8(%arg0: i32) -> (i32, i32) {
    %c0_i32 = arith.constant 0 : i32
    %c0_i32_0 = arith.constant 0 : i32
    %c0_i32_1 = arith.constant 0 : i32
    return %c0_i32, %c0_i32_0 : i32, i32
  }
  func.func @transform_9(%arg0: i32) -> (i32, i32) {
    %c0_i32 = arith.constant 0 : i32
    %c0_i32_0 = arith.constant 0 : i32
    return %arg0, %c0_i32 : i32, i32
  }
}

</mosaic_0001>

<llo_original>
// kernel: soft_q_forward.1
$region0: #{soft_q_forward.1}
  #allocation0 [shape = 'u32[]', space=smem, size = 0x4, offset = 0x4, fixed_abs, tag = 'smem constant byte address 0x4 - core index']
  #allocation1 [shape = 'u32[144,128]{1,0:T(1,128)}', space=vmem, size = 0x12000, scoped, tag = 'internal scratch']
  #allocation2 [shape = 'f32[1,1]{1,0:T(1,128)S(6)}', space=smem, size = 0x200, scoped, tag = 'scoped memory for soft_q_forward.1']
  %s0 = inlined_call_operand.hbm [shape: f32[8,24], index: 0, kind: input, shape index: {}]
  %s1 = inlined_call_operand.hbm [shape: f32[8,8], index: 1, kind: input, shape index: {}]
  %s2 = inlined_call_operand.hbm [shape: f32[24,256], index: 2, kind: input, shape index: {}]
  %s3 = inlined_call_operand.hbm [shape: f32[8,256], index: 3, kind: input, shape index: {}]
  %s4 = inlined_call_operand.vmem [shape: f32[1,256], index: 4, kind: input, shape index: {}]
  %s5 = inlined_call_operand.hbm [shape: f32[256,256], index: 5, kind: input, shape index: {}]
  %s6 = inlined_call_operand.vmem [shape: f32[1,256], index: 6, kind: input, shape index: {}]
  %s7 = inlined_call_operand.vmem [shape: f32[1,256], index: 7, kind: input, shape index: {}]
  %s8 = inlined_call_operand.<no memory space> [shape: f32[1,1], index: 8, kind: input, shape index: {}]
  %s9 = inlined_call_operand.vmem [shape: f32[8,1], index: 9, kind: output, shape index: {}]
  %s10 = sld [smem:[#allocation0]]
  $region66: #{soft_q_forward.1} parent=0
    _
  %s12 = ssub.s32 1, %s10
  %s13 = scalar_select 0, %s12, %s10
  %14 = sst [smem:[#allocation2]] %s8
  $region1: #{soft_q_forward.1} parent=0
    #allocation3 [shape = 'u8[4096]{0}', space=vmem, size = 0x1000, scoped, tag = 'input window, operand 0, single buffered']
    #allocation4 [shape = 's32[1]{0}', space=sflag, size = 0x4, scoped, tag = 'scoped memory for soft_q_forward.1']
    #allocation5 [shape = 'u8[4096]{0}', space=vmem, size = 0x1000, scoped, tag = 'input window, operand 1, single buffered']
    #allocation6 [shape = 's32[1]{0}', space=sflag, size = 0x4, scoped, tag = 'scoped memory for soft_q_forward.1']
    #allocation7 [shape = 'u8[24576]{0}', space=vmem, size = 0x6000, scoped, tag = 'input window, operand 2, single buffered']
    #allocation8 [shape = 'u8[8192]{0}', space=vmem, size = 0x2000, scoped, tag = 'input window, operand 3, single buffered']
    #allocation9 [shape = 's32[1]{0}', space=sflag, size = 0x4, scoped, tag = 'scoped memory for soft_q_forward.1']
    #allocation10 [shape = 'u8[262144]{0}', space=vmem, size = 0x40000, scoped, tag = 'input window, operand 5, single buffered']
    %15 = vsyncpa [#allocation4], 0
    %16 = vsyncpa [#allocation6], 0
    %17 = vsyncpa [#allocation9], 0
    // Predicated region
    $region2: #{soft_q_forward.1} parent=1 // pred_check
      _
    $region3: #{soft_q_forward.1} parent=1 // pred_check_branch
      %19 = sbr.rel (0) target = $region5
    $region4: #{soft_q_forward.1} parent=1 // pred_region
      %s21 = ssub.s32 128, 128
      %22 = vsyncadd [#allocation4], %s21
      %s24 = sshll.u32 [#allocation3], 4
      %s25 = int_to_ptr.vmem [resolvable:$true] %s24
      %27 = dma.hbm_to_vmem [thread:$0]  %s0, 128, %s25, [#allocation4]
    $region5: #{soft_q_forward.1} parent=1 // pred_fallthru
      _
    // Predicated region
    $region6: #{soft_q_forward.1} parent=1 // pred_check
      _
    $region7: #{soft_q_forward.1} parent=1 // pred_check_branch
      %29 = sbr.rel (0) target = $region9
    $region8: #{soft_q_forward.1} parent=1 // pred_region
      %s31 = ssub.s32 128, 128
      %32 = vsyncadd [#allocation6], %s31
      %s34 = sshll.u32 [#allocation5], 4
      %s35 = int_to_ptr.vmem [resolvable:$true] %s34
      %37 = dma.hbm_to_vmem [thread:$0]  %s1, 128, %s35, [#allocation6]
    $region9: #{soft_q_forward.1} parent=1 // pred_fallthru
      _
    // Predicated region
    $region10: #{soft_q_forward.1} parent=1 // pred_check
      _
    $region11: #{soft_q_forward.1} parent=1 // pred_check_branch
      %39 = sbr.rel (0) target = $region13
    $region12: #{soft_q_forward.1} parent=1 // pred_region
      %s41 = ssub.s32 768, 768
      %42 = vsyncadd [#allocation6], %s41
      %s43 = sshll.u32 [#allocation7], 4
      %s44 = int_to_ptr.vmem [resolvable:$true] %s43
      %49 = dma.hbm_to_vmem [thread:$0]  %s2, 768, %s44, [#allocation6], 256, 256, 16
    $region13: #{soft_q_forward.1} parent=1 // pred_fallthru
      _
    // Predicated region
    $region14: #{soft_q_forward.1} parent=1 // pred_check
      _
    $region15: #{soft_q_forward.1} parent=1 // pred_check_branch
      %51 = sbr.rel (0) target = $region17
    $region16: #{soft_q_forward.1} parent=1 // pred_region
      %s53 = ssub.s32 256, 256
      %54 = vsyncadd [#allocation9], %s53
      %s56 = sshll.u32 [#allocation8], 4
      %s57 = int_to_ptr.vmem [resolvable:$true] %s56
      %59 = dma.hbm_to_vmem [thread:$0]  %s3, 256, %s57, [#allocation9]
    $region17: #{soft_q_forward.1} parent=1 // pred_fallthru
      _
    // Predicated region
    $region18: #{soft_q_forward.1} parent=1 // pred_check
      _
    $region19: #{soft_q_forward.1} parent=1 // pred_check_branch
      %61 = sbr.rel (0) target = $region21
    $region20: #{soft_q_forward.1} parent=1 // pred_region
      _
    $region21: #{soft_q_forward.1} parent=1 // pred_fallthru
      _
    // Predicated region
    $region22: #{soft_q_forward.1} parent=1 // pred_check
      _
    $region23: #{soft_q_forward.1} parent=1 // pred_check_branch
      %63 = sbr.rel (0) target = $region25
    $region24: #{soft_q_forward.1} parent=1 // pred_region
      %s65 = ssub.s32 8192, 8192
      %66 = vsyncadd [#allocation9], %s65
      %s67 = sshll.u32 [#allocation10], 4
      %s68 = int_to_ptr.vmem [resolvable:$true] %s67
      %73 = dma.hbm_to_vmem [thread:$0]  %s5, 8192, %s68, [#allocation9], 256, 256, 16
    $region25: #{soft_q_forward.1} parent=1 // pred_fallthru
      _
    // Predicated region
    $region26: #{soft_q_forward.1} parent=1 // pred_check
      _
    $region27: #{soft_q_forward.1} parent=1 // pred_check_branch
      %75 = sbr.rel (0) target = $region29
    $region28: #{soft_q_forward.1} parent=1 // pred_region
      _
    $region29: #{soft_q_forward.1} parent=1 // pred_fallthru
      _
    // Predicated region
    $region30: #{soft_q_forward.1} parent=1 // pred_check
      _
    $region31: #{soft_q_forward.1} parent=1 // pred_check_branch
      %77 = sbr.rel (0) target = $region33
    $region32: #{soft_q_forward.1} parent=1 // pred_region
      _
    $region33: #{soft_q_forward.1} parent=1 // pred_fallthru
      _
    // Predicated region
    $region34: #{soft_q_forward.1} parent=1 // pred_check
      _
    $region35: #{soft_q_forward.1} parent=1 // pred_check_branch
      %79 = sbr.rel (0) target = $region37
    $region36: #{soft_q_forward.1} parent=1 // pred_region
      _
    $region37: #{soft_q_forward.1} parent=1 // pred_fallthru
      _
    // Predicated region
    $region38: #{soft_q_forward.1} parent=1 // pred_check
      _
    $region39: #{soft_q_forward.1} parent=1 // pred_check_branch
      %81 = sbr.rel (0) target = $region41
    $region40: #{soft_q_forward.1} parent=1 // pred_region
      %82 = dma.done [#allocation4], 128
    $region41: #{soft_q_forward.1} parent=1 // pred_fallthru
      _
    // Predicated region
    $region42: #{soft_q_forward.1} parent=1 // pred_check
      _
    $region43: #{soft_q_forward.1} parent=1 // pred_check_branch
      %84 = sbr.rel (0) target = $region45
    $region44: #{soft_q_forward.1} parent=1 // pred_region
      %85 = dma.done [#allocation6], 128
    $region45: #{soft_q_forward.1} parent=1 // pred_fallthru
      _
    // Predicated region
    $region46: #{soft_q_forward.1} parent=1 // pred_check
      _
    $region47: #{soft_q_forward.1} parent=1 // pred_check_branch
      %87 = sbr.rel (0) target = $region49
    $region48: #{soft_q_forward.1} parent=1 // pred_region
      %88 = dma.done [#allocation6], 768
    $region49: #{soft_q_forward.1} parent=1 // pred_fallthru
      _
    // Predicated region
    $region50: #{soft_q_forward.1} parent=1 // pred_check
      _
    $region51: #{soft_q_forward.1} parent=1 // pred_check_branch
      %90 = sbr.rel (0) target = $region53
    $region52: #{soft_q_forward.1} parent=1 // pred_region
      %91 = dma.done [#allocation9], 256
    $region53: #{soft_q_forward.1} parent=1 // pred_fallthru
      _
    // Predicated region
    $region54: #{soft_q_forward.1} parent=1 // pred_check
      _
    $region55: #{soft_q_forward.1} parent=1 // pred_check_branch
      %93 = sbr.rel (0) target = $region57
    $region56: #{soft_q_forward.1} parent=1 // pred_region
      %94 = dma.done [#allocation9], 8192
    $region57: #{soft_q_forward.1} parent=1 // pred_fallthru
      _
    %v95 = vld [vmem:[#allocation3] sm:$0xff]
    %v96 = vld [vmem:[#allocation7] sm:$0xff]
    %v97 = vld [vmem:[#allocation7 + $0x8] sm:$0xff]
    %v98 = vld [vmem:[#allocation7 + $0x10] sm:$0xff]
    %v99 = vld [vmem:[#allocation7 + $0x18] sm:$0xff]
    %v100 = vld [vmem:[#allocation7 + $0x20] sm:$0xff]
    %v101 = vld [vmem:[#allocation7 + $0x28] sm:$0xff]
    %v102 = vld [vmem:[#allocation5] sm:$0xff]
    %v103 = vld [vmem:[#allocation8] sm:$0xff]
    %v104 = vld [vmem:[#allocation8 + $0x8] sm:$0xff]
    %vm105 = vcmask 64512
    %v107 = vsel %vm105, %v102, 0
    %109 = vmatprep.subr.mxu0 %v104
    %110 = vmatpush1.msra.mxu0 %v103
    %111 = vmatprep.subr.mxu0 0.0
    %112 = vmatpush1.msra.mxu0 0.0
    %113 = vmatprep.subr.mxu0 0.0
    %114 = vmatpush1.msra.mxu0 0.0
    %115 = vmatprep.subr.mxu0 0.0
    %116 = vmatpush1.msra.mxu0 0.0
    %117 = vmatprep.subr.mxu0 0.0
    %118 = vmatpush1.msra.mxu0 0.0
    %119 = vmatprep.subr.mxu0 0.0
    %120 = vmatpush1.msra.mxu0 0.0
    %121 = vmatprep.subr.mxu0 0.0
    %122 = vmatpush1.msra.mxu0 0.0
    %123 = vmatprep.subr.mxu0 0.0
    %124 = vmatpush1.msra.mxu0 0.0
    %125 = vmatprep.subr.mxu0 0.0
    %126 = vmatpush1.msra.mxu0 0.0
    %127 = vmatprep.subr.mxu0 0.0
    %128 = vmatpush1.msra.mxu0 0.0
    %129 = vmatprep.subr.mxu0 0.0
    %130 = vmatpush1.msra.mxu0 0.0
    %131 = vmatprep.subr.mxu0 0.0
    %132 = vmatpush1.msra.mxu0 0.0
    %133 = vmatprep.subr.mxu0 0.0
    %134 = vmatpush1.msra.mxu0 0.0
    %135 = vmatprep.subr.mxu0 0.0
    %136 = vmatpush1.msra.mxu0 0.0
    %137 = vmatprep.subr.mxu0 0.0
    %138 = vmatpush1.msra.mxu0 0.0
    %139 = vmatprep.subr.mxu0 0.0
    %140 = vmatpush1.msra.mxu0 0.0
    %141 = vmatprep.subr.mxu0 0.0
    %142 = vmatpush1.msra.mxu0 0.0
    %143 = vmatprep.subr.mxu0 0.0
    %144 = vmatpush1.msra.mxu0 0.0
    %145 = vmatprep.subr.mxu0 0.0
    %146 = vmatpush1.msra.mxu0 0.0
    %147 = vmatprep.subr.mxu0 0.0
    %148 = vmatpush1.msra.mxu0 0.0
    %149 = vmatprep.subr.mxu0 0.0
    %150 = vmatpush1.msra.mxu0 0.0
    %151 = vmatprep.subr.mxu0 0.0
    %152 = vmatpush1.msra.mxu0 0.0
    %153 = vmatprep.subr.mxu0 0.0
    %154 = vmatpush1.msra.mxu0 0.0
    %155 = vmatprep.subr.mxu0 0.0
    %156 = vmatpush1.msra.mxu0 0.0
    %157 = vmatprep.subr.mxu0 0.0
    %158 = vmatpush1.msra.mxu0 0.0
    %159 = vmatprep.subr.mxu0 0.0
    %160 = vmatpush1.msra.mxu0 0.0
    %161 = vmatprep.subr.mxu0 0.0
    %162 = vmatpush1.msra.mxu0 0.0
    %163 = vmatprep.subr.mxu0 0.0
    %164 = vmatpush1.msra.mxu0 0.0
    %165 = vmatprep.subr.mxu0 0.0
    %166 = vmatpush1.msra.mxu0 0.0
    %167 = vmatprep.subr.mxu0 0.0
    %168 = vmatpush1.msra.mxu0 0.0
    %169 = vmatprep.subr.mxu0 0.0
    %170 = vmatpush1.msra.mxu0 0.0
    %171 = vmatprep.subr.mxu0 0.0
    %172 = vmatpush1.msra.mxu0 0.0
    %173 = vmatprep.mubr.f32.mxu0 0.0
    %174 = vmatmul.mubr.f32.gmra.mrb[0].mxu0 %v107
    %v175 = vpop.f32.mrb[0].mxu0
    %v176 = vadd.f32 0.0, %v175
    %v177 = vpop.f32.mrb[0].mxu0
    %v178 = vadd.f32 0.0, %v177
    %179 = vdwg.mxu0
    %vm180 = vcmask 195584
    %v182 = vsel %vm180, %v95, 0
    %184 = vmatprep.subr.mxu0 %v97
    %185 = vmatpush1.msra.mxu0 %v96
    %186 = vmatprep.subr.mxu0 %v99
    %187 = vmatpush1.msra.mxu0 %v98
    %188 = vmatprep.subr.mxu0 %v101
    %189 = vmatpush1.msra.mxu0 %v100
    %190 = vmatprep.subr.mxu0 0.0
    %191 = vmatpush1.msra.mxu0 0.0
    %192 = vmatprep.subr.mxu0 0.0
    %193 = vmatpush1.msra.mxu0 0.0
    %194 = vmatprep.subr.mxu0 0.0
    %195 = vmatpush1.msra.mxu0 0.0
    %196 = vmatprep.subr.mxu0 0.0
    %197 = vmatpush1.msra.mxu0 0.0
    %198 = vmatprep.subr.mxu0 0.0
    %199 = vmatpush1.msra.mxu0 0.0
    %200 = vmatprep.subr.mxu0 0.0
    %201 = vmatpush1.msra.mxu0 0.0
    %202 = vmatprep.subr.mxu0 0.0
    %203 = vmatpush1.msra.mxu0 0.0
    %204 = vmatprep.subr.mxu0 0.0
    %205 = vmatpush1.msra.mxu0 0.0
    %206 = vmatprep.subr.mxu0 0.0
    %207 = vmatpush1.msra.mxu0 0.0
    %208 = vmatprep.subr.mxu0 0.0
    %209 = vmatpush1.msra.mxu0 0.0
    %210 = vmatprep.subr.mxu0 0.0
    %211 = vmatpush1.msra.mxu0 0.0
    %212 = vmatprep.subr.mxu0 0.0
    %213 = vmatpush1.msra.mxu0 0.0
    %214 = vmatprep.subr.mxu0 0.0
    %215 = vmatpush1.msra.mxu0 0.0
    %216 = vmatprep.subr.mxu0 0.0
    %217 = vmatpush1.msra.mxu0 0.0
    %218 = vmatprep.subr.mxu0 0.0
    %219 = vmatpush1.msra.mxu0 0.0
    %220 = vmatprep.subr.mxu0 0.0
    %221 = vmatpush1.msra.mxu0 0.0
    %222 = vmatprep.subr.mxu0 0.0
    %223 = vmatpush1.msra.mxu0 0.0
    %224 = vmatprep.subr.mxu0 0.0
    %225 = vmatpush1.msra.mxu0 0.0
    %226 = vmatprep.subr.mxu0 0.0
    %227 = vmatpush1.msra.mxu0 0.0
    %228 = vmatprep.subr.mxu0 0.0
    %229 = vmatpush1.msra.mxu0 0.0
    %230 = vmatprep.subr.mxu0 0.0
    %231 = vmatpush1.msra.mxu0 0.0
    %232 = vmatprep.subr.mxu0 0.0
    %233 = vmatpush1.msra.mxu0 0.0
    %234 = vmatprep.subr.mxu0 0.0
    %235 = vmatpush1.msra.mxu0 0.0
    %236 = vmatprep.subr.mxu0 0.0
    %237 = vmatpush1.msra.mxu0 0.0
    %238 = vmatprep.subr.mxu0 0.0
    %239 = vmatpush1.msra.mxu0 0.0
    %240 = vmatprep.subr.mxu0 0.0
    %241 = vmatpush1.msra.mxu0 0.0
    %242 = vmatprep.subr.mxu0 0.0
    %243 = vmatpush1.msra.mxu0 0.0
    %244 = vmatprep.subr.mxu0 0.0
    %245 = vmatpush1.msra.mxu0 0.0
    %246 = vmatprep.subr.mxu0 0.0
    %247 = vmatpush1.msra.mxu0 0.0
    %248 = vmatprep.mubr.f32.mxu0 0.0
    %249 = vmatmul.mubr.f32.gmra.mrb[0].mxu0 %v182
    %v250 = vpop.f32.mrb[0].mxu0
    %v251 = vadd.f32 %v176, %v250
    %v252 = vpop.f32.mrb[0].mxu0
    %v253 = vadd.f32 %v178, %v252
    %254 = vdwg.mxu0
    %v255 = vld [vmem:[%s4] sm:$0x3]
    %v257 = vlaneseq
    %v258 = vshrl.u32 %v257, 7
    %v259 = vsub.s32 0, %v258
    %v260 = vrot.slane %v255, %v259
    %v261 = vlaneseq
    %v262 = vshrl.u32 %v261, 7
    %v263 = vsub.s32 1, %v262
    %v264 = vrot.slane %v255, %v263
    %v267 = vadd.f32 %v251, %v260
    %v268 = vadd.f32 %v253, %v264
    %v269 = vmax.f32 %v267, 0.0
    %v270 = vmax.f32 %v268, 0.0
    %v271 = vld [vmem:[#allocation10] sm:$0xff]
    %v272 = vld [vmem:[#allocation10 + $0x8] sm:$0xff]
    %v273 = vld [vmem:[#allocation10 + $0x10] sm:$0xff]
    %v274 = vld [vmem:[#allocation10 + $0x18] sm:$0xff]
    %v275 = vld [vmem:[#allocation10 + $0x20] sm:$0xff]
    %v276 = vld [vmem:[#allocation10 + $0x28] sm:$0xff]
    %v277 = vld [vmem:[#allocation10 + $0x30] sm:$0xff]
    %v278 = vld [vmem:[#allocation10 + $0x38] sm:$0xff]
    %v279 = vld [vmem:[#allocation10 + $0x40] sm:$0xff]
    %v280 = vld [vmem:[#allocation10 + $0x48] sm:$0xff]
    %v281 = vld [vmem:[#allocation10 + $0x50] sm:$0xff]
    %v282 = vld [vmem:[#allocation10 + $0x58] sm:$0xff]
    %v283 = vld [vmem:[#allocation10 + $0x60] sm:$0xff]
    %v284 = vld [vmem:[#allocation10 + $0x68] sm:$0xff]
    %v285 = vld [vmem:[#allocation10 + $0x70] sm:$0xff]
    %v286 = vld [vmem:[#allocation10 + $0x78] sm:$0xff]
    %v287 = vld [vmem:[#allocation10 + $0x80] sm:$0xff]
    %v288 = vld [vmem:[#allocation10 + $0x88] sm:$0xff]
    %v289 = vld [vmem:[#allocation10 + $0x90] sm:$0xff]
    %v290 = vld [vmem:[#allocation10 + $0x98] sm:$0xff]
    %v291 = vld [vmem:[#allocation10 + $0xa0] sm:$0xff]
    %v292 = vld [vmem:[#allocation10 + $0xa8] sm:$0xff]
    %v293 = vld [vmem:[#allocation10 + $0xb0] sm:$0xff]
    %v294 = vld [vmem:[#allocation10 + $0xb8] sm:$0xff]
    %v295 = vld [vmem:[#allocation10 + $0xc0] sm:$0xff]
    %v296 = vld [vmem:[#allocation10 + $0xc8] sm:$0xff]
    %v297 = vld [vmem:[#allocation10 + $0xd0] sm:$0xff]
    %v298 = vld [vmem:[#allocation10 + $0xd8] sm:$0xff]
    %v299 = vld [vmem:[#allocation10 + $0xe0] sm:$0xff]
    %v300 = vld [vmem:[#allocation10 + $0xe8] sm:$0xff]
    %v301 = vld [vmem:[#allocation10 + $0xf0] sm:$0xff]
    %v302 = vld [vmem:[#allocation10 + $0xf8] sm:$0xff]
    %v303 = vld [vmem:[#allocation10 + $0x100] sm:$0xff]
    %v304 = vld [vmem:[#allocation10 + $0x108] sm:$0xff]
    %v305 = vld [vmem:[#allocation10 + $0x110] sm:$0xff]
    %v306 = vld [vmem:[#allocation10 + $0x118] sm:$0xff]
    %v307 = vld [vmem:[#allocation10 + $0x120] sm:$0xff]
    %v308 = vld [vmem:[#allocation10 + $0x128] sm:$0xff]
    %v309 = vld [vmem:[#allocation10 + $0x130] sm:$0xff]
    %v310 = vld [vmem:[#allocation10 + $0x138] sm:$0xff]
    %v311 = vld [vmem:[#allocation10 + $0x140] sm:$0xff]
    %v312 = vld [vmem:[#allocation10 + $0x148] sm:$0xff]
    %v313 = vld [vmem:[#allocation10 + $0x150] sm:$0xff]
    %v314 = vld [vmem:[#allocation10 + $0x158] sm:$0xff]
    %v315 = vld [vmem:[#allocation10 + $0x160] sm:$0xff]
    %v316 = vld [vmem:[#allocation10 + $0x168] sm:$0xff]
    %v317 = vld [vmem:[#allocation10 + $0x170] sm:$0xff]
    %v318 = vld [vmem:[#allocation10 + $0x178] sm:$0xff]
    %v319 = vld [vmem:[#allocation10 + $0x180] sm:$0xff]
    %v320 = vld [vmem:[#allocation10 + $0x188] sm:$0xff]
    %v321 = vld [vmem:[#allocation10 + $0x190] sm:$0xff]
    %v322 = vld [vmem:[#allocation10 + $0x198] sm:$0xff]
    %v323 = vld [vmem:[#allocation10 + $0x1a0] sm:$0xff]
    %v324 = vld [vmem:[#allocation10 + $0x1a8] sm:$0xff]
    %v325 = vld [vmem:[#allocation10 + $0x1b0] sm:$0xff]
    %v326 = vld [vmem:[#allocation10 + $0x1b8] sm:$0xff]
    %v327 = vld [vmem:[#allocation10 + $0x1c0] sm:$0xff]
    %v328 = vld [vmem:[#allocation10 + $0x1c8] sm:$0xff]
    %v329 = vld [vmem:[#allocation10 + $0x1d0] sm:$0xff]
    %v330 = vld [vmem:[#allocation10 + $0x1d8] sm:$0xff]
    %v331 = vld [vmem:[#allocation10 + $0x1e0] sm:$0xff]
    %v332 = vld [vmem:[#allocation10 + $0x1e8] sm:$0xff]
    %v333 = vld [vmem:[#allocation10 + $0x1f0] sm:$0xff]
    %v334 = vld [vmem:[#allocation10 + $0x1f8] sm:$0xff]
    %v335 = vld [vmem:[%s6] sm:$0x3]
    %v337 = vlaneseq
    %v338 = vshrl.u32 %v337, 7
    %v339 = vsub.s32 0, %v338
    %v340 = vrot.slane %v335, %v339
    %v341 = vlaneseq
    %v342 = vshrl.u32 %v341, 7
    %v343 = vsub.s32 1, %v342
    %v344 = vrot.slane %v335, %v343
    %347 = vmatprep.subr.mxu0 %v272
    %348 = vmatpush1.msra.mxu0 %v271
    %349 = vmatprep.subr.mxu0 %v274
    %350 = vmatpush1.msra.mxu0 %v273
    %351 = vmatprep.subr.mxu0 %v276
    %352 = vmatpush1.msra.mxu0 %v275
    %353 = vmatprep.subr.mxu0 %v278
    %354 = vmatpush1.msra.mxu0 %v277
    %355 = vmatprep.subr.mxu0 %v280
    %356 = vmatpush1.msra.mxu0 %v279
    %357 = vmatprep.subr.mxu0 %v282
    %358 = vmatpush1.msra.mxu0 %v281
    %359 = vmatprep.subr.mxu0 %v284
    %360 = vmatpush1.msra.mxu0 %v283
    %361 = vmatprep.subr.mxu0 %v286
    %362 = vmatpush1.msra.mxu0 %v285
    %363 = vmatprep.subr.mxu0 %v288
    %364 = vmatpush1.msra.mxu0 %v287
    %365 = vmatprep.subr.mxu0 %v290
    %366 = vmatpush1.msra.mxu0 %v289
    %367 = vmatprep.subr.mxu0 %v292
    %368 = vmatpush1.msra.mxu0 %v291
    %369 = vmatprep.subr.mxu0 %v294
    %370 = vmatpush1.msra.mxu0 %v293
    %371 = vmatprep.subr.mxu0 %v296
    %372 = vmatpush1.msra.mxu0 %v295
    %373 = vmatprep.subr.mxu0 %v298
    %374 = vmatpush1.msra.mxu0 %v297
    %375 = vmatprep.subr.mxu0 %v300
    %376 = vmatpush1.msra.mxu0 %v299
    %377 = vmatprep.subr.mxu0 %v302
    %378 = vmatpush1.msra.mxu0 %v301
    %379 = vmatprep.subr.mxu0 %v304
    %380 = vmatpush1.msra.mxu0 %v303
    %381 = vmatprep.subr.mxu0 %v306
    %382 = vmatpush1.msra.mxu0 %v305
    %383 = vmatprep.subr.mxu0 %v308
    %384 = vmatpush1.msra.mxu0 %v307
    %385 = vmatprep.subr.mxu0 %v310
    %386 = vmatpush1.msra.mxu0 %v309
    %387 = vmatprep.subr.mxu0 %v312
    %388 = vmatpush1.msra.mxu0 %v311
    %389 = vmatprep.subr.mxu0 %v314
    %390 = vmatpush1.msra.mxu0 %v313
    %391 = vmatprep.subr.mxu0 %v316
    %392 = vmatpush1.msra.mxu0 %v315
    %393 = vmatprep.subr.mxu0 %v318
    %394 = vmatpush1.msra.mxu0 %v317
    %395 = vmatprep.subr.mxu0 %v320
    %396 = vmatpush1.msra.mxu0 %v319
    %397 = vmatprep.subr.mxu0 %v322
    %398 = vmatpush1.msra.mxu0 %v321
    %399 = vmatprep.subr.mxu0 %v324
    %400 = vmatpush1.msra.mxu0 %v323
    %401 = vmatprep.subr.mxu0 %v326
    %402 = vmatpush1.msra.mxu0 %v325
    %403 = vmatprep.subr.mxu0 %v328
    %404 = vmatpush1.msra.mxu0 %v327
    %405 = vmatprep.subr.mxu0 %v330
    %406 = vmatpush1.msra.mxu0 %v329
    %407 = vmatprep.subr.mxu0 %v332
    %408 = vmatpush1.msra.mxu0 %v331
    %409 = vmatprep.subr.mxu0 %v334
    %410 = vmatpush1.msra.mxu0 %v333
    %411 = vmatprep.mubr.f32.mxu0 %v270
    %412 = vmatmul.mubr.f32.gmra.mrb[0].mxu0 %v269
    %v413 = vpop.f32.mrb[0].mxu0
    %v414 = vadd.f32 %v340, %v413
    %v415 = vpop.f32.mrb[0].mxu0
    %v416 = vadd.f32 %v344, %v415
    %417 = vdwg.mxu0
    %v418 = vmax.f32 %v414, 0.0
    %v419 = vmax.f32 %v416, 0.0
    %v420 = vld [vmem:[%s7] sm:$0x3]
    %v422 = vlaneseq
    %v423 = vshrl.u32 %v422, 7
    %v424 = vsub.s32 0, %v423
    %v425 = vrot.slane %v420, %v424
    %v426 = vlaneseq
    %v427 = vshrl.u32 %v426, 7
    %v428 = vsub.s32 1, %v427
    %v429 = vrot.slane %v420, %v428
    %v432 = vmul.f32 %v418, %v425
    %v433 = vmul.f32 %v419, %v429
    %v434 = vadd.f32 %v432, %v433
    %435 = vadd.xlane.f32.xlu0 %v434
    %v436 = vpop.xlane.xlu0 %435
    %s437 = sld [smem:[#allocation2]]
    %v438 = vstv %s437
    %v439 = vadd.f32 %v436, %v438
    %vm440 = vcmask 7168
    %441 = vst.msk [vmem:[%s9] sm:$0xff] %vm440, %v439
    // Predicated region
    $region58: #{soft_q_forward.1} parent=1 // pred_check
      _
    $region59: #{soft_q_forward.1} parent=1 // pred_check_branch
      %443 = sbr.rel (0) target = $region61
    $region60: #{soft_q_forward.1} parent=1 // pred_region
      _
    $region61: #{soft_q_forward.1} parent=1 // pred_fallthru
      _
    // Predicated region
    $region62: #{soft_q_forward.1} parent=1 // pred_check
      _
    $region63: #{soft_q_forward.1} parent=1 // pred_check_branch
      %445 = sbr.rel (0) target = $region65
    $region64: #{soft_q_forward.1} parent=1 // pred_region
      _
    $region65: #{soft_q_forward.1} parent=1 // pred_fallthru
      _
    %446 = vsyncpa [#allocation4], 1
    %447 = vsyncpa [#allocation6], 1
    %448 = vsyncpa [#allocation9], 1

</llo_original>
